<compile_context>
chip_gen: v7x
topology: tpu7x:2x2x1
jax: 0.10.0
libtpu: 0.0.40
codegen_flags: <defaults>
</compile_context>

<pallas_src>
import functools
import math

import jax
import jax.numpy as jnp
from jax.experimental import pallas as pl
from jax.experimental.pallas import tpu as pltpu


def _round_up(v, m):
    return ((v + m - 1) // m) * m


def _style_film_kernel(x_ref, w_ref, gain_ref, cbias_ref, o_ref, *, matmul_dtype):
    # x_ref:     (1, TN, IN)   original x dtype; cast to matmul dtype on the VPU here
    # w_ref:     (IN, OUT)     matmul dtype, resident across grid steps
    # gain_ref:  (1, 1, OUT)   f32, per-batch FiLM gain (already *15 + 30)
    # cbias_ref: (1, 1, OUT)   f32, gain * linear_bias + film_bias (folded)
    # o_ref:     (1, TN, OUT)
    x = x_ref[0]
    if x.dtype != matmul_dtype:
        x = x.astype(matmul_dtype)
    h = jnp.dot(x, w_ref[...], preferred_element_type=jnp.float32)   # (TN, OUT) f32
    o_ref[0] = jnp.sin(gain_ref[0] * h + cbias_ref[0]).astype(o_ref.dtype)


def _choose_tile_n(n, in_dim, out_dim, x_itemsize, o_itemsize, budget_bytes):
    """Largest N-tile (multiple of 16, <= n) whose VMEM footprint fits the budget."""
    if n <= 16:
        return n                        # single block equal to the full dim (always legal)
    in_l = _round_up(in_dim, 128)       # account for lane padding of the minor dims in VMEM
    out_l = _round_up(out_dim, 128)
    # Per row: double-buffered x + out tiles, plus the f32 h / sin intermediates.
    per_row = 2 * (in_l * x_itemsize + out_l * o_itemsize) + 2 * out_l * 4
    for cand in (2048, 1024, 512, 256, 128, 64, 32, 16):
        if cand <= n and cand * per_row <= budget_bytes:
            return cand
    return 16


def style_film_layer(x, style, w, b, gw, gb, bw, bb, *,
                     matmul_dtype=jnp.bfloat16, out_dtype=jnp.bfloat16,
                     vmem_budget_bytes=None):
    """StyleFiLMLayer forward.

    x: (b, n, in_dim), style: (b, style_dim). Weights are passed pre-transposed
    as (in_features, out_features): w/b -> linear, gw/gb -> gain_fc, bw/bb -> bias_fc.
    Returns (b, n, out_dim) in out_dtype (default bfloat16).
    """
    if x.ndim != 3:
        # TODO(synk): PyTorch forward returns None for 2-D x; only the 3-D path is meaningful.
        raise NotImplementedError("only (b, n, c) inputs are supported")

    B, N, IN = x.shape
    OUT = w.shape[1]
    out_dtype = jnp.dtype(out_dtype)
    matmul_dtype = jnp.dtype(matmul_dtype)
    f32 = jnp.float32

    # Per-batch FiLM parameters: one batched (B,S)x(S,OUT) matmul, hoisted out of
    # the hot loop. Linear bias folded into the FiLM bias:
    #   sin(gain*(x@W + b) + bias) == sin(gain*(x@W) + (gain*b + bias)).
    gain = (style.astype(f32) @ gw.astype(f32) + gb.astype(f32)) * 15.0 + 30.0   # (B, OUT)
    fbias = style.astype(f32) @ bw.astype(f32) + bb.astype(f32)                  # (B, OUT)
    cbias = gain * b.astype(f32)[None, :] + fbias                                # (B, OUT)
    gain3 = gain.reshape(B, 1, OUT)
    cbias3 = cbias.reshape(B, 1, OUT)

    wm = w.astype(matmul_dtype)   # tiny; x itself is cast inside the kernel (no extra x pass)

    x_isz = x.dtype.itemsize
    o_isz = out_dtype.itemsize
    w_isz = matmul_dtype.itemsize
    IN_L = _round_up(IN, 128)
    OUT_L = _round_up(OUT, 128)

    # VMEM budget / limit: generous on v5e/v6e (128 MiB VMEM), conservative on v7x (64 MiB).
    try:
        vmem_cap = int(pltpu.get_tpu_info().vmem_capacity_bytes)
    except Exception:
        vmem_cap = 64 << 20
    hard_cap = (40 << 20) if vmem_cap <= (64 << 20) else (72 << 20)
    if vmem_budget_bytes is None:
        vmem_budget_bytes = max(8 << 20, min(int(0.4 * vmem_cap), hard_cap - (8 << 20)))

    TN = _choose_tile_n(N, IN, OUT, x_isz, o_isz, vmem_budget_bytes)
    NT = pl.cdiv(N, TN)

    vmem_need = (2 * TN * (IN_L * x_isz + OUT_L * o_isz)   # double-buffered x + out tiles
                 + 2 * TN * OUT_L * 4                      # f32 h + sin intermediates
                 + IN_L * OUT_L * w_isz                    # resident weight (single buffer)
                 + 4 * 2 * OUT_L * 4)                      # gain + folded bias (double-buffered)
    vmem_limit = int(min(max(int(1.5 * vmem_need), 8 << 20), hard_cap))

    cost = pl.CostEstimate(
        flops=2 * B * N * IN * OUT,
        transcendentals=B * N * OUT,
        bytes_accessed=int(x.size * x_isz + wm.size * w_isz
                           + B * N * OUT * o_isz + 2 * B * OUT * 4),
    )

    # Put an even / large axis first so v7x's 2 TensorCores both get work.
    if B % 2 == 0:
        grid = (B, NT)
        x_idx = lambda bi, ti: (bi, ti, 0)
        w_idx = lambda bi, ti: (0, 0)
        g_idx = lambda bi, ti: (bi, 0, 0)
    else:
        grid = (NT, B)
        x_idx = lambda ti, bi: (bi, ti, 0)
        w_idx = lambda ti, bi: (0, 0)
        g_idx = lambda ti, bi: (bi, 0, 0)

    kernel = functools.partial(_style_film_kernel, matmul_dtype=matmul_dtype)

    def build(single_buffer_weight):
        w_kwargs = {"pipeline_mode": pl.Buffered(1)} if single_buffer_weight else {}
        return pl.pallas_call(
            kernel,
            out_shape=jax.ShapeDtypeStruct((B, N, OUT), out_dtype),
            grid_spec=pltpu.PrefetchScalarGridSpec(
                num_scalar_prefetch=0,
                grid=grid,
                in_specs=[
                    pl.BlockSpec((1, TN, IN), x_idx),             # x N-tile (original dtype)
                    pl.BlockSpec((IN, OUT), w_idx, **w_kwargs),   # W, resident
                    pl.BlockSpec((1, 1, OUT), g_idx),             # gain (per batch)
                    pl.BlockSpec((1, 1, OUT), g_idx),             # gain*b + bias (per batch)
                ],
                out_specs=pl.BlockSpec((1, TN, OUT), x_idx),
            ),
            compiler_params=pltpu.CompilerParams(
                dimension_semantics=("parallel", "parallel"),
                vmem_limit_bytes=vmem_limit,
            ),
            cost_estimate=cost,
        )

    try:
        # Single-buffered weight: constant index map, no need to double-buffer it.
        return jax.block_until_ready(build(True)(x, wm, gain3, cbias3))
    except Exception:
        # Fall back to the default (previously validated) buffering if pipeline_mode
        # is not supported by this lowering.
        return jax.block_until_ready(build(False)(x, wm, gain3, cbias3))


def _reference(x, style, w, b, gw, gb, bw, bb):
    gain = style @ gw + gb
    gain = gain * 15.0 + 30.0
    bias = style @ bw + bb
    h = jnp.einsum("bnc,co->bno", x, w) + b
    return jnp.sin(gain[:, None, :] * h + bias[:, None, :])


if __name__ == "__main__":
    # Small deterministic example shapes: x (b, n, in_dim), style (b, style_dim).
    B, N, IN, OUT, S = 2, 8, 32, 32, 16

    key = jax.random.PRNGKey(0)
    keys = jax.random.split(key, 8)

    # linear: frequency_init(25); bias: default PyTorch U(-1/sqrt(in), 1/sqrt(in))
    w_bound = math.sqrt(6.0 / IN) / 25.0
    w = jax.random.uniform(keys[0], (IN, OUT), jnp.float32, -w_bound, w_bound)
    b_bound = 1.0 / math.sqrt(IN)
    b = jax.random.uniform(keys[1], (OUT,), jnp.float32, -b_bound, b_bound)

    # gain_fc / bias_fc: default PyTorch Linear init, weight scaled by 0.25.
    s_bound = 1.0 / math.sqrt(S)
    gw = 0.25 * jax.random.uniform(keys[2], (S, OUT), jnp.float32, -s_bound, s_bound)
    gb = jax.random.uniform(keys[3], (OUT,), jnp.float32, -s_bound, s_bound)
    bw = 0.25 * jax.random.uniform(keys[4], (S, OUT), jnp.float32, -s_bound, s_bound)
    bb = jax.random.uniform(keys[5], (OUT,), jnp.float32, -s_bound, s_bound)

    x = jax.random.normal(keys[6], (B, N, IN), jnp.float32)
    style = jax.random.normal(keys[7], (B, S), jnp.float32)

    ref = _reference(x, style, w, b, gw, gb, bw, bb)

    # Exact-semantics check with an f32 matmul path and f32 output.
    out_f32 = style_film_layer(x, style, w, b, gw, gb, bw, bb,
                               matmul_dtype=jnp.float32, out_dtype=jnp.float32)
    assert out_f32.shape == (B, N, OUT)
    assert jnp.allclose(out_f32, ref, atol=1e-5, rtol=1e-5), "f32 path mismatch vs reference"

    # Ragged-N + odd-B case: exercises the masked partial last tile and the (NT, B)
    # grid ordering without any wrapper-side padding or slicing.
    B2, N2 = 3, 37
    x2 = jax.random.normal(keys[6], (B2, N2, IN), jnp.float32)
    style2 = jax.random.normal(keys[7], (B2, S), jnp.float32)
    ref2 = _reference(x2, style2, w, b, gw, gb, bw, bb)
    out2 = style_film_layer(x2, style2, w, b, gw, gb, bw, bb,
                            matmul_dtype=jnp.float32, out_dtype=jnp.float32)
    assert out2.shape == (B2, N2, OUT)
    assert jnp.allclose(out2, ref2, atol=1e-5, rtol=1e-5), "ragged-N path mismatch vs reference"

    # Default (bf16-fed MXU, bf16 output) path: looser tolerance due to bf16 rounding.
    out_bf16 = style_film_layer(x, style, w, b, gw, gb, bw, bb)
    assert out_bf16.shape == (B, N, OUT)
    assert out_bf16.dtype == jnp.bfloat16
    err = float(jnp.max(jnp.abs(out_bf16.astype(jnp.float32) - ref)))
    assert err < 1e-1, f"bf16 path mismatch vs reference (max abs err {err})"

    print("KERNEL_OK")
</pallas_src>

<mosaic_0001>
module attributes {stable_mosaic.version = 11 : i64} {
  func.func @_style_film_kernel(%arg0: i32, %arg1: i32, %arg2: memref<1x8x32xf32, #tpu.memory_space<vmem>>, %arg3: memref<32x32xf32, #tpu.memory_space<vmem>>, %arg4: memref<1x1x32xf32, #tpu.memory_space<vmem>>, %arg5: memref<1x1x32xf32, #tpu.memory_space<vmem>>, %arg6: memref<1x8x32xf32, #tpu.memory_space<vmem>>) attributes {dimension_semantics = [#tpu.dimension_semantics<parallel>, #tpu.dimension_semantics<parallel>], iteration_bounds = array<i64: 2, 1>, scalar_prefetch = 0 : i64, scratch_operands = 0 : i64, tpu.core_type = #tpu.core_type<tc>, window_params = [{transform_indices = @transform_0, window_bounds = array<i64: 1, 8, 32>}, {pipeline_mode = #tpu.pipeline_mode<synchronous>, transform_indices = @transform_1, window_bounds = array<i64: 32, 32>}, {transform_indices = @transform_2, window_bounds = array<i64: 1, 1, 32>}, {transform_indices = @transform_3, window_bounds = array<i64: 1, 1, 32>}, {transform_indices = @transform_4, window_bounds = array<i64: 1, 8, 32>}]} {
    %c0 = arith.constant 0 : index
    %c0_0 = arith.constant 0 : index
    %c0_1 = arith.constant 0 : index
    %0 = vector.load %arg2[%c0, %c0_0, %c0_1] : memref<1x8x32xf32, #tpu.memory_space<vmem>>, vector<1x8x32xf32>
    %1 = vector.shape_cast %0 : vector<1x8x32xf32> to vector<8x32xf32>
    %c0_2 = arith.constant 0 : index
    %c0_3 = arith.constant 0 : index
    %2 = vector.load %arg3[%c0_2, %c0_3] : memref<32x32xf32, #tpu.memory_space<vmem>>, vector<32x32xf32>
    %cst = arith.constant dense<0.000000e+00> : vector<8x32xf32>
    %3 = tpu.matmul %1, %2, %cst {dimension_numbers = #tpu.dot_dimension_numbers<[1], [0], [0], [1], [0, 0, 1, 1], [], []>} : vector<8x32xf32>, vector<32x32xf32>, vector<8x32xf32> -> vector<8x32xf32>
    %c0_4 = arith.constant 0 : index
    %c0_5 = arith.constant 0 : index
    %c0_6 = arith.constant 0 : index
    %4 = vector.load %arg4[%c0_4, %c0_5, %c0_6] : memref<1x1x32xf32, #tpu.memory_space<vmem>>, vector<1x1x32xf32>
    %5 = vector.shape_cast %4 : vector<1x1x32xf32> to vector<1x32xf32>
    %6 = vector.broadcast %5 : vector<1x32xf32> to vector<8x32xf32>
    %7 = arith.mulf %6, %3 : vector<8x32xf32>
    %c0_7 = arith.constant 0 : index
    %c0_8 = arith.constant 0 : index
    %c0_9 = arith.constant 0 : index
    %8 = vector.load %arg5[%c0_7, %c0_8, %c0_9] : memref<1x1x32xf32, #tpu.memory_space<vmem>>, vector<1x1x32xf32>
    %9 = vector.shape_cast %8 : vector<1x1x32xf32> to vector<1x32xf32>
    %10 = vector.broadcast %9 : vector<1x32xf32> to vector<8x32xf32>
    %11 = arith.addf %7, %10 : vector<8x32xf32>
    %12 = math.sin %11 : vector<8x32xf32>
    %c0_10 = arith.constant 0 : index
    %c0_11 = arith.constant 0 : index
    %c0_12 = arith.constant 0 : index
    %13 = vector.load %arg6[%c0_10, %c0_11, %c0_12] : memref<1x8x32xf32, #tpu.memory_space<vmem>>, vector<1x8x32xf32>
    %14 = vector.shape_cast %13 : vector<1x8x32xf32> to vector<8x32xf32>
    %15 = vector.shape_cast %12 : vector<8x32xf32> to vector<1x8x32xf32>
    tpu.vector_store %arg6[%c0_10, %c0_11, %c0_12], %15 {strides = array<i32>} : memref<1x8x32xf32, #tpu.memory_space<vmem>>, vector<1x8x32xf32>,
    return
  }
  func.func @transform_0(%arg0: i32, %arg1: i32) -> (i32, i32, i32) {
    %c0_i32 = arith.constant 0 : i32
    %c0_i32_0 = arith.constant 0 : i32
    return %arg0, %arg1, %c0_i32 : i32, i32, i32
  }
  func.func @transform_1(%arg0: i32, %arg1: i32) -> (i32, i32) {
    %c0_i32 = arith.constant 0 : i32
    %c0_i32_0 = arith.constant 0 : i32
    %c0_i32_1 = arith.constant 0 : i32
    return %c0_i32, %c0_i32_0 : i32, i32
  }
  func.func @transform_2(%arg0: i32, %arg1: i32) -> (i32, i32, i32) {
    %c0_i32 = arith.constant 0 : i32
    %c0_i32_0 = arith.constant 0 : i32
    %c0_i32_1 = arith.constant 0 : i32
    return %arg0, %c0_i32, %c0_i32_0 : i32, i32, i32
  }
  func.func @transform_3(%arg0: i32, %arg1: i32) -> (i32, i32, i32) {
    %c0_i32 = arith.constant 0 : i32
    %c0_i32_0 = arith.constant 0 : i32
    %c0_i32_1 = arith.constant 0 : i32
    return %arg0, %c0_i32, %c0_i32_0 : i32, i32, i32
  }
  func.func @transform_4(%arg0: i32, %arg1: i32) -> (i32, i32, i32) {
    %c0_i32 = arith.constant 0 : i32
    %c0_i32_0 = arith.constant 0 : i32
    return %arg0, %arg1, %c0_i32 : i32, i32, i32
  }
}

module attributes {stable_mosaic.version = 11 : i64} {
  func.func @_style_film_kernel(%arg0: i32, %arg1: i32, %arg2: memref<1x8x32xf32, #tpu.memory_space<vmem>>, %arg3: memref<32x32xf32, #tpu.memory_space<vmem>>, %arg4: memref<1x1x32xf32, #tpu.memory_space<vmem>>, %arg5: memref<1x1x32xf32, #tpu.memory_space<vmem>>, %arg6: memref<1x8x32xf32, #tpu.memory_space<vmem>>) attributes {dimension_semantics = [#tpu.dimension_semantics<parallel>, #tpu.dimension_semantics<parallel>], iteration_bounds = array<i64: 2, 1>, scalar_prefetch = 0 : i64, scratch_operands = 0 : i64, tpu.core_type = #tpu.core_type<tc>, window_params = [{transform_indices = @transform_0, window_bounds = array<i64: 1, 8, 32>}, {pipeline_mode = #tpu.pipeline_mode<synchronous>, transform_indices = @transform_1, window_bounds = array<i64: 32, 32>}, {transform_indices = @transform_2, window_bounds = array<i64: 1, 1, 32>}, {transform_indices = @transform_3, window_bounds = array<i64: 1, 1, 32>}, {transform_indices = @transform_4, window_bounds = array<i64: 1, 8, 32>}]} {
    %c0 = arith.constant 0 : index
    %c0_0 = arith.constant 0 : index
    %c0_1 = arith.constant 0 : index
    %0 = vector.load %arg2[%c0, %c0_0, %c0_1] : memref<1x8x32xf32, #tpu.memory_space<vmem>>, vector<1x8x32xf32>
    %1 = vector.shape_cast %0 : vector<1x8x32xf32> to vector<8x32xf32>
    %c0_2 = arith.constant 0 : index
    %c0_3 = arith.constant 0 : index
    %2 = vector.load %arg3[%c0_2, %c0_3] : memref<32x32xf32, #tpu.memory_space<vmem>>, vector<32x32xf32>
    %cst = arith.constant dense<0.000000e+00> : vector<8x32xf32>
    %3 = tpu.matmul %1, %2, %cst {dimension_numbers = #tpu.dot_dimension_numbers<[1], [0], [0], [1], [0, 0, 1, 1], [], []>} : vector<8x32xf32>, vector<32x32xf32>, vector<8x32xf32> -> vector<8x32xf32>
    %c0_4 = arith.constant 0 : index
    %c0_5 = arith.constant 0 : index
    %c0_6 = arith.constant 0 : index
    %4 = vector.load %arg4[%c0_4, %c0_5, %c0_6] : memref<1x1x32xf32, #tpu.memory_space<vmem>>, vector<1x1x32xf32>
    %5 = vector.shape_cast %4 : vector<1x1x32xf32> to vector<1x32xf32>
    %6 = vector.broadcast %5 : vector<1x32xf32> to vector<8x32xf32>
    %7 = arith.mulf %6, %3 : vector<8x32xf32>
    %c0_7 = arith.constant 0 : index
    %c0_8 = arith.constant 0 : index
    %c0_9 = arith.constant 0 : index
    %8 = vector.load %arg5[%c0_7, %c0_8, %c0_9] : memref<1x1x32xf32, #tpu.memory_space<vmem>>, vector<1x1x32xf32>
    %9 = vector.shape_cast %8 : vector<1x1x32xf32> to vector<1x32xf32>
    %10 = vector.broadcast %9 : vector<1x32xf32> to vector<8x32xf32>
    %11 = arith.addf %7, %10 : vector<8x32xf32>
    %12 = math.sin %11 : vector<8x32xf32>
    %c0_10 = arith.constant 0 : index
    %c0_11 = arith.constant 0 : index
    %c0_12 = arith.constant 0 : index
    %13 = vector.load %arg6[%c0_10, %c0_11, %c0_12] : memref<1x8x32xf32, #tpu.memory_space<vmem>>, vector<1x8x32xf32>
    %14 = vector.shape_cast %13 : vector<1x8x32xf32> to vector<8x32xf32>
    %15 = vector.shape_cast %12 : vector<8x32xf32> to vector<1x8x32xf32>
    tpu.vector_store %arg6[%c0_10, %c0_11, %c0_12], %15 {strides = array<i32>} : memref<1x8x32xf32, #tpu.memory_space<vmem>>, vector<1x8x32xf32>,
    return
  }
  func.func @transform_0(%arg0: i32, %arg1: i32) -> (i32, i32, i32) {
    %c0_i32 = arith.constant 0 : i32
    %c0_i32_0 = arith.constant 0 : i32
    return %arg0, %arg1, %c0_i32 : i32, i32, i32
  }
  func.func @transform_1(%arg0: i32, %arg1: i32) -> (i32, i32) {
    %c0_i32 = arith.constant 0 : i32
    %c0_i32_0 = arith.constant 0 : i32
    %c0_i32_1 = arith.constant 0 : i32
    return %c0_i32, %c0_i32_0 : i32, i32
  }
  func.func @transform_2(%arg0: i32, %arg1: i32) -> (i32, i32, i32) {
    %c0_i32 = arith.constant 0 : i32
    %c0_i32_0 = arith.constant 0 : i32
    %c0_i32_1 = arith.constant 0 : i32
    return %arg0, %c0_i32, %c0_i32_0 : i32, i32, i32
  }
  func.func @transform_3(%arg0: i32, %arg1: i32) -> (i32, i32, i32) {
    %c0_i32 = arith.constant 0 : i32
    %c0_i32_0 = arith.constant 0 : i32
    %c0_i32_1 = arith.constant 0 : i32
    return %arg0, %c0_i32, %c0_i32_0 : i32, i32, i32
  }
  func.func @transform_4(%arg0: i32, %arg1: i32) -> (i32, i32, i32) {
    %c0_i32 = arith.constant 0 : i32
    %c0_i32_0 = arith.constant 0 : i32
    return %arg0, %arg1, %c0_i32 : i32, i32, i32
  }
}

</mosaic_0001>

<llo_original>
// kernel: tpu_custom_call.1
$region0: #{tpu_custom_call.1}
  #allocation0 [shape = 'u32[]', space=smem, size = 0x4, offset = 0x4, fixed_abs, tag = 'smem constant byte address 0x4 - core index']
  #allocation1 [shape = 'u32[144,128]{1,0:T(1,128)}', space=vmem, size = 0x12000, scoped, tag = 'internal scratch']
  %s0 = inlined_call_operand.hbm [shape: f32[2,8,32], index: 0, kind: input, shape index: {}]
  %s1 = inlined_call_operand.hbm [shape: f32[32,32], index: 1, kind: input, shape index: {}]
  %s2 = inlined_call_operand.vmem [shape: f32[2,1,32], index: 2, kind: input, shape index: {}]
  %s3 = inlined_call_operand.vmem [shape: f32[2,1,32], index: 3, kind: input, shape index: {}]
  %s4 = inlined_call_operand.hbm [shape: f32[2,8,32], index: 4, kind: output, shape index: {}]
  %s5 = sld [smem:[#allocation0]]
  $region57: #{tpu_custom_call.1} parent=0
    _
  %s7 = ssub.s32 1, %s5
  %s8 = scalar_select 0, %s7, %s5
  $region1: #{tpu_custom_call.1} parent=0
    #allocation2 [shape = 'u8[8192]{0}', space=vmem, size = 0x2000, scoped, tag = 'input window, operand 0']
    #allocation3 [shape = 's32[2]{0}', space=sflag, size = 0x8, scoped, tag = 'scoped memory for tpu_custom_call.1']
    #allocation4 [shape = 's32[2]{0}', space=sflag, size = 0x8, scoped, tag = 'scoped memory for tpu_custom_call.1']
    #allocation5 [shape = 'u8[16384]{0}', space=vmem, size = 0x4000, scoped, tag = 'input window, operand 1, single buffered']
    #allocation6 [shape = 's32[1]{0}', space=sflag, size = 0x4, scoped, tag = 'scoped memory for tpu_custom_call.1']
    #allocation7 [shape = 'u8[8192]{0}', space=vmem, size = 0x2000, scoped, tag = 'output window, operand 0']
    %9 = vsyncpa [#allocation3], 0
    %s10 = scalar_lea.sflag [#allocation3], 1
    %11 = vsyncpa %s10, 0
    %12 = vsyncpa [#allocation6], 0
    %13 = vsyncpa [#allocation4], 0
    %s14 = scalar_lea.sflag [#allocation4], 1
    %15 = vsyncpa %s14, 0
    loop: start=0, step=1, limit=4
    $region2: #{tpu_custom_call.1} parent=1 // loop_pre_header
      _
    $region3: #{tpu_custom_call.1} parent=1 // loop_header
      %s17 = sphi 0, %s21
      %p18 = scmp.ge.s32.totalorder %s17, 4
      %s24 = sphi 0, %s36
      %s25 = sphi 0, %s32
      %s26 = sphi 0, %s24
      %s27 = sphi 0, %s25
      %s28 = sphi 0, %s26
      %s29 = sphi 0, %s27
      %s41 = sphi 0, %s43
      %s44 = sphi 0, %s41
      %s45 = sphi 0, %s44
      %s61 = sphi 0, %s45
      %s65 = sphi 0, %s65
      %s67 = sphi 0, %s65
      %s68 = sphi 0, %s67
      %s82 = sphi 0, %s68
      %s88 = sphi 0, %s90
      %s91 = sphi 0, %s88
      %s92 = sphi 0, %s91
      %s108 = sphi 0, %s92
      %s114 = sphi 0, %s116
      %s117 = sphi 0, %s114
      %s118 = sphi 0, %s117
      %s134 = sphi 0, %s118
      %s142 = sphi 0, %s144
      %s145 = sphi 0, %s142
      %s146 = sphi 0, %s145
      %s162 = sphi 0, %s146
    $region4: #{tpu_custom_call.1} parent=1 // loop_header_branch
      %20 = sbr.rel (%p18) target = $region8
    $region5: #{tpu_custom_call.1} parent=1 // loop_body
      %s22 = ssub.s32 %s17, 1
      %s23 = ssub.s32 %s17, 2
      %s30 = sadd.s32 1, %s25
      %p31 = scmp.ge.s32.totalorder %s30, 1
      %s32 = scalar_select %p31, 0, %s30
      %s33 = sadd.s32 1, %s24
      %s34 = scalar_select %p31, %s33, %s24
      %p35 = scmp.ge.s32.totalorder %s34, 2
      %s36 = scalar_select %p35, 0, %s34
      %s37 = ssub.s32 %s24, %s36
      %s38 = ssub.s32 %s25, %s32
      %s39 = sor.u32 %s37, %s38
      %p40 = scmp.eq.s32.totalorder %s39, 0
      %s42 = sadd.s32 %s41, 1
      %s43 = scalar_select %p40, %s41, %s42
      %p46 = pneg %p40
      %p47 = scmp.eq.s32.totalorder %s17, 1
      %p48 = por %p46, %p47
      %p49 = scmp.ne.s32.totalorder %s41, %s44
      %p50 = scmp.eq.s32.totalorder %s17, 0
      %p51 = por %p49, %p50
      %p52 = scmp.ne.s32.totalorder %s41, %s44
      %p53 = scmp.eq.s32.totalorder %s22, 1
      %p54 = por %p52, %p53
      %p55 = scmp.ne.s32.totalorder %s44, %s45
      %p56 = scmp.eq.s32.totalorder %s22, 0
      %p57 = por %p55, %p56
      %p58 = scmp.ne.s32.totalorder %s44, %s45
      %p59 = scmp.eq.s32.totalorder %s23, 1
      %p60 = por %p58, %p59
      %p62 = scmp.ne.s32.totalorder %s45, %s61
      %p63 = scmp.eq.s32.totalorder %s23, 0
      %p64 = por %p62, %p63
      %s66 = sadd.s32 %s65, 1
      %p69 = scmp.eq.s32.totalorder %s17, 1
      %p70 = scmp.ne.s32.totalorder %s65, %s67
      %p71 = scmp.eq.s32.totalorder %s17, 0
      %p72 = por %p70, %p71
      %p73 = scmp.ne.s32.totalorder %s65, %s67
      %p74 = scmp.eq.s32.totalorder %s22, 1
      %p75 = por %p73, %p74
      %p76 = scmp.ne.s32.totalorder %s67, %s68
      %p77 = scmp.eq.s32.totalorder %s22, 0
      %p78 = por %p76, %p77
      %p79 = scmp.ne.s32.totalorder %s67, %s68
      %p80 = scmp.eq.s32.totalorder %s23, 1
      %p81 = por %p79, %p80
      %p83 = scmp.ne.s32.totalorder %s68, %s82
      %p84 = scmp.eq.s32.totalorder %s23, 0
      %p85 = por %p83, %p84
      %s86 = ssub.s32 %s24, %s36
      %p87 = scmp.eq.s32.totalorder %s86, 0
      %s89 = sadd.s32 %s88, 1
      %s90 = scalar_select %p87, %s88, %s89
      %p93 = pneg %p87
      %p94 = scmp.eq.s32.totalorder %s17, 1
      %p95 = por %p93, %p94
      %p96 = scmp.ne.s32.totalorder %s88, %s91
      %p97 = scmp.eq.s32.totalorder %s17, 0
      %p98 = por %p96, %p97
      %p99 = scmp.ne.s32.totalorder %s88, %s91
      %p100 = scmp.eq.s32.totalorder %s22, 1
      %p101 = por %p99, %p100
      %p102 = scmp.ne.s32.totalorder %s91, %s92
      %p103 = scmp.eq.s32.totalorder %s22, 0
      %p104 = por %p102, %p103
      %p105 = scmp.ne.s32.totalorder %s91, %s92
      %p106 = scmp.eq.s32.totalorder %s23, 1
      %p107 = por %p105, %p106
      %p109 = scmp.ne.s32.totalorder %s92, %s108
      %p110 = scmp.eq.s32.totalorder %s23, 0
      %p111 = por %p109, %p110
      %s112 = ssub.s32 %s24, %s36
      %p113 = scmp.eq.s32.totalorder %s112, 0
      %s115 = sadd.s32 %s114, 1
      %s116 = scalar_select %p113, %s114, %s115
      %p119 = pneg %p113
      %p120 = scmp.eq.s32.totalorder %s17, 1
      %p121 = por %p119, %p120
      %p122 = scmp.ne.s32.totalorder %s114, %s117
      %p123 = scmp.eq.s32.totalorder %s17, 0
      %p124 = por %p122, %p123
      %p125 = scmp.ne.s32.totalorder %s114, %s117
      %p126 = scmp.eq.s32.totalorder %s22, 1
      %p127 = por %p125, %p126
      %p128 = scmp.ne.s32.totalorder %s117, %s118
      %p129 = scmp.eq.s32.totalorder %s22, 0
      %p130 = por %p128, %p129
      %p131 = scmp.ne.s32.totalorder %s117, %s118
      %p132 = scmp.eq.s32.totalorder %s23, 1
      %p133 = por %p131, %p132
      %p135 = scmp.ne.s32.totalorder %s118, %s134
      %p136 = scmp.eq.s32.totalorder %s23, 0
      %p137 = por %p135, %p136
      %s138 = ssub.s32 %s24, %s36
      %s139 = ssub.s32 %s25, %s32
      %s140 = sor.u32 %s138, %s139
      %p141 = scmp.eq.s32.totalorder %s140, 0
      %s143 = sadd.s32 %s142, 1
      %s144 = scalar_select %p141, %s142, %s143
      %p147 = pneg %p141
      %p148 = scmp.eq.s32.totalorder %s17, 1
      %p149 = por %p147, %p148
      %p150 = scmp.ne.s32.totalorder %s142, %s145
      %p151 = scmp.eq.s32.totalorder %s17, 0
      %p152 = por %p150, %p151
      %p153 = scmp.ne.s32.totalorder %s142, %s145
      %p154 = scmp.eq.s32.totalorder %s22, 1
      %p155 = por %p153, %p154
      %p156 = scmp.ne.s32.totalorder %s145, %s146
      %p157 = scmp.eq.s32.totalorder %s22, 0
      %p158 = por %p156, %p157
      %p159 = scmp.ne.s32.totalorder %s145, %s146
      %p160 = scmp.eq.s32.totalorder %s23, 1
      %p161 = por %p159, %p160
      %p163 = scmp.ne.s32.totalorder %s146, %s162
      %p164 = scmp.eq.s32.totalorder %s23, 0
      %p165 = por %p163, %p164
      %p166 = scmp.le.s32.totalorder 1, %s17
      %p167 = scmp.lt.s32.totalorder %s17, 3
      %p168 = pnand %p166, %p167
      %p169 = pneg %p168
      // Predicated region
      $region9: #{tpu_custom_call.1} parent=5 // pred_check
        _
      $region10: #{tpu_custom_call.1} parent=5 // pred_check_branch
        %171 = sbr.rel (%p168) target = $region12
      $region11: #{tpu_custom_call.1} parent=5 // pred_region
        %s172 = ssub.s32 %s17, 1
        // Predicated region
        $region13: #{tpu_custom_call.1} parent=11 // pred_check
          %p173 = pneg %p78
        $region14: #{tpu_custom_call.1} parent=11 // pred_check_branch
          %175 = sbr.rel (%p173) target = $region16
        $region15: #{tpu_custom_call.1} parent=11 // pred_region
          %s177 = ssub.s32 512, 512
          %178 = vsyncadd [#allocation6], %s177
          %s179 = sshll.u32 [#allocation5], 4
          %s180 = int_to_ptr.vmem [resolvable:$true] %s179
          %185 = dma.hbm_to_vmem [thread:$0]  %s1, 512, %s180, [#allocation6], 128, 128, 8
        $region16: #{tpu_custom_call.1} parent=11 // pred_fallthru
          _
      $region12: #{tpu_custom_call.1} parent=5 // pred_fallthru
        _
      %p186 = scmp.lt.s32.totalorder %s17, 2
      // Predicated region
      $region17: #{tpu_custom_call.1} parent=5 // pred_check
        %p187 = pneg %p186
      $region18: #{tpu_custom_call.1} parent=5 // pred_check_branch
        %189 = sbr.rel (%p187) target = $region20
      $region19: #{tpu_custom_call.1} parent=5 // pred_region
        // Predicated region
        $region21: #{tpu_custom_call.1} parent=19 // pred_check
          %p190 = pneg %p51
        $region22: #{tpu_custom_call.1} parent=19 // pred_check_branch
          %192 = sbr.rel (%p190) target = $region24
        $region23: #{tpu_custom_call.1} parent=19 // pred_region
          %s193 = sand.u32 %s41, 1
          %s194 = scalar_lea.sflag [#allocation3], %s193
          %s195 = sand.u32 %s41, 1
          %s196 = smul.addr %s195, 8
          %s197 = scalar_lea.vmem [#allocation2], %s196
          %s199 = ssub.s32 128, 128
          %200 = vsyncadd %s194, %s199
          %s201 = sadd.s32 %s25, %s24
          %s202 = smul.addr %s201, 128
          %s203 = scalar_lea.hbm %s0, %s202
          %s205 = sshll.u32 %s197, 4
          %s206 = int_to_ptr.vmem [resolvable:$true] %s205
          %208 = dma.hbm_to_vmem [thread:$0]  %s203, 128, %s206, %s194
        $region24: #{tpu_custom_call.1} parent=19 // pred_fallthru
          _
        // Predicated region
        $region25: #{tpu_custom_call.1} parent=19 // pred_check
          %p209 = pneg %p98
        $region26: #{tpu_custom_call.1} parent=19 // pred_check_branch
          %211 = sbr.rel (%p209) target = $region28
        $region27: #{tpu_custom_call.1} parent=19 // pred_region
          %p212 = scmp.lt.s32.totalorder %s24, 1
          %s213 = scalar_select %p212, %s24, 1
          %s214 = scalar_lea.vmem %s2, %s213
        $region28: #{tpu_custom_call.1} parent=19 // pred_fallthru
          _
        // Predicated region
        $region29: #{tpu_custom_call.1} parent=19 // pred_check
          %p215 = pneg %p124
        $region30: #{tpu_custom_call.1} parent=19 // pred_check_branch
          %217 = sbr.rel (%p215) target = $region32
        $region31: #{tpu_custom_call.1} parent=19 // pred_region
          %p218 = scmp.lt.s32.totalorder %s24, 1
          %s219 = scalar_select %p218, %s24, 1
          %s220 = scalar_lea.vmem %s3, %s219
        $region32: #{tpu_custom_call.1} parent=19 // pred_fallthru
          _
      $region20: #{tpu_custom_call.1} parent=5 // pred_fallthru
        _
      %p221 = scmp.le.s32.totalorder 1, %s17
      %p222 = scmp.lt.s32.totalorder %s17, 3
      %p223 = pnand %p221, %p222
      %p224 = pneg %p223
      // Predicated region
      $region33: #{tpu_custom_call.1} parent=5 // pred_check
        _
      $region34: #{tpu_custom_call.1} parent=5 // pred_check_branch
        %226 = sbr.rel (%p223) target = $region36
      $region35: #{tpu_custom_call.1} parent=5 // pred_region
        %s227 = ssub.s32 %s17, 1
        %s228 = sand.u32 %s44, 1
        %s229 = scalar_lea.sflag [#allocation3], %s228
        %s230 = sand.u32 %s44, 1
        %s231 = smul.addr %s230, 8
        %s232 = scalar_lea.vmem [#allocation2], %s231
        // Predicated region
        $region37: #{tpu_custom_call.1} parent=35 // pred_check
          %p233 = pneg %p57
        $region38: #{tpu_custom_call.1} parent=35 // pred_check_branch
          %235 = sbr.rel (%p233) target = $region40
        $region39: #{tpu_custom_call.1} parent=35 // pred_region
          %236 = dma.done %s229, 128
        $region40: #{tpu_custom_call.1} parent=35 // pred_fallthru
          _
        // Predicated region
        $region41: #{tpu_custom_call.1} parent=35 // pred_check
          %p237 = pneg %p78
        $region42: #{tpu_custom_call.1} parent=35 // pred_check_branch
          %239 = sbr.rel (%p237) target = $region44
        $region43: #{tpu_custom_call.1} parent=35 // pred_region
          %240 = dma.done [#allocation6], 512
        $region44: #{tpu_custom_call.1} parent=35 // pred_fallthru
          _
        %s241 = sand.u32 %s44, 1
        %s242 = scalar_lea.sflag [#allocation3], %s241
        %s243 = sand.u32 %s44, 1
        %s244 = smul.addr %s243, 8
        %s245 = scalar_lea.vmem [#allocation2], %s244
        %p246 = pneg %p57
        %p247 = pneg %p54
        %p248 = pneg %p78
        %p249 = pneg %p75
        %p250 = scmp.lt.s32.totalorder %s26, 1
        %s251 = scalar_select %p250, %s26, 1
        %s252 = scalar_lea.vmem %s2, %s251
        %p253 = pneg %p104
        %p254 = pneg %p101
        %p255 = scmp.lt.s32.totalorder %s26, 1
        %s256 = scalar_select %p255, %s26, 1
        %s257 = scalar_lea.vmem %s3, %s256
        %p258 = pneg %p130
        %p259 = pneg %p127
        %p260 = pneg %p158
        %p261 = pneg %p155
        %s262 = sand.u32 %s145, 1
        %s263 = scalar_lea.sflag [#allocation4], %s262
        %s264 = sand.u32 %s145, 1
        %s265 = smul.addr %s264, 8
        %s266 = scalar_lea.vmem [#allocation7], %s265
        %p267 = scmp.lt.s32.totalorder %s26, 1
        %s268 = scalar_select %p267, %s26, 1
        %s269 = scalar_lea.vmem %s2, %s268
        %p270 = scmp.lt.s32.totalorder %s26, 1
        %s271 = scalar_select %p270, %s26, 1
        %s272 = scalar_lea.vmem %s3, %s271
        %v273 = vld [vmem:[%s232] sm:$0xff]
        %v274 = vld [vmem:[#allocation5] sm:$0xff]
        %v275 = vld [vmem:[#allocation5 + $0x8] sm:$0xff]
        %v276 = vld [vmem:[#allocation5 + $0x10] sm:$0xff]
        %v277 = vld [vmem:[#allocation5 + $0x18] sm:$0xff]
        %vm278 = vcmask 261120
        %v280 = vsel %vm278, %v273, 0
        %282 = vmatprep.subr.mxu0 0.0
        %283 = vmatpush1.msra.mxu0 %v274
        %284 = vmatprep.subr.mxu0 0.0
        %285 = vmatpush1.msra.mxu0 %v275
        %286 = vmatprep.subr.mxu0 0.0
        %287 = vmatpush1.msra.mxu0 %v276
        %288 = vmatprep.subr.mxu0 0.0
        %289 = vmatpush1.msra.mxu0 %v277
        %290 = vmatprep.subr.mxu0 0.0
        %291 = vmatpush1.msra.mxu0 0.0
        %292 = vmatprep.subr.mxu0 0.0
        %293 = vmatpush1.msra.mxu0 0.0
        %294 = vmatprep.subr.mxu0 0.0
        %295 = vmatpush1.msra.mxu0 0.0
        %296 = vmatprep.subr.mxu0 0.0
        %297 = vmatpush1.msra.mxu0 0.0
        %298 = vmatprep.subr.mxu0 0.0
        %299 = vmatpush1.msra.mxu0 0.0
        %300 = vmatprep.subr.mxu0 0.0
        %301 = vmatpush1.msra.mxu0 0.0
        %302 = vmatprep.subr.mxu0 0.0
        %303 = vmatpush1.msra.mxu0 0.0
        %304 = vmatprep.subr.mxu0 0.0
        %305 = vmatpush1.msra.mxu0 0.0
        %306 = vmatprep.subr.mxu0 0.0
        %307 = vmatpush1.msra.mxu0 0.0
        %308 = vmatprep.subr.mxu0 0.0
        %309 = vmatpush1.msra.mxu0 0.0
        %310 = vmatprep.subr.mxu0 0.0
        %311 = vmatpush1.msra.mxu0 0.0
        %312 = vmatprep.subr.mxu0 0.0
        %313 = vmatpush1.msra.mxu0 0.0
        %314 = vmatprep.subr.mxu0 0.0
        %315 = vmatpush1.msra.mxu0 0.0
        %316 = vmatprep.subr.mxu0 0.0
        %317 = vmatpush1.msra.mxu0 0.0
        %318 = vmatprep.subr.mxu0 0.0
        %319 = vmatpush1.msra.mxu0 0.0
        %320 = vmatprep.subr.mxu0 0.0
        %321 = vmatpush1.msra.mxu0 0.0
        %322 = vmatprep.subr.mxu0 0.0
        %323 = vmatpush1.msra.mxu0 0.0
        %324 = vmatprep.subr.mxu0 0.0
        %325 = vmatpush1.msra.mxu0 0.0
        %326 = vmatprep.subr.mxu0 0.0
        %327 = vmatpush1.msra.mxu0 0.0
        %328 = vmatprep.subr.mxu0 0.0
        %329 = vmatpush1.msra.mxu0 0.0
        %330 = vmatprep.subr.mxu0 0.0
        %331 = vmatpush1.msra.mxu0 0.0
        %332 = vmatprep.subr.mxu0 0.0
        %333 = vmatpush1.msra.mxu0 0.0
        %334 = vmatprep.subr.mxu0 0.0
        %335 = vmatpush1.msra.mxu0 0.0
        %336 = vmatprep.subr.mxu0 0.0
        %337 = vmatpush1.msra.mxu0 0.0
        %338 = vmatprep.subr.mxu0 0.0
        %339 = vmatpush1.msra.mxu0 0.0
        %340 = vmatprep.subr.mxu0 0.0
        %341 = vmatpush1.msra.mxu0 0.0
        %342 = vmatprep.subr.mxu0 0.0
        %343 = vmatpush1.msra.mxu0 0.0
        %344 = vmatprep.subr.mxu0 0.0
        %345 = vmatpush1.msra.mxu0 0.0
        %346 = vmatprep.mubr.f32.mxu0 0.0
        %347 = vmatmul.mubr.f32.gmra.mrb[0].mxu0 %v280
        %v348 = vpop.f32.mrb[0].mxu0
        %v349 = vadd.f32 0.0, %v348
        %v350 = vpop.f32.mrb[0].mxu0
        %351 = vdwg.mxu0
        %v352 = vld [vmem:[%s269] sm:$0x1]
        %v354 = vlaneseq
        %v355 = vshrl.u32 %v354, 7
        %v356 = vsub.s32 0, %v355
        %v357 = vrot.slane %v352, %v356
        %v359 = vmul.f32 %v357, %v349
        %v360 = vld [vmem:[%s272] sm:$0x1]
        %v362 = vlaneseq
        %v363 = vshrl.u32 %v362, 7
        %v364 = vsub.s32 0, %v363
        %v365 = vrot.slane %v360, %v364
        %v367 = vadd.f32 %v359, %v365
        %v368 = vand.u32 2147483647, %v367
        %vm369 = vcmp.le.f32.partialorder %v368, 0.7853982
        %vm370 = vcmp.lt.s32.totalorder %v367, 0
        %v371 = vand.u32 %v367, 2139095040
        %v372 = vshrl.u32 %v371, 23
        %v373 = vsub.s32 %v372, 127
        %v374 = vand.u32 2147483647, %v367
        %v375 = vand.u32 %v374, 8388607
        %v376 = vor.u32 %v375, 8388608
        %v377 = vsub.s32 0, %v376
        %v378 = vadd.s32 %v373, 1
        %vm379 = vcmp.gt.s32.totalorder %v378, 0
        %v380 = vsel %vm379, %v378, 0
        %v381 = vshrl.u32 %v380, 5
        %v382 = vand.u32 %v380, 31
        %v383 = vsub.s32 32, %v382
        %v384 = vshrl.u32 683565275, %v383
        %v385 = vshll.u32 683565275, %v382
        %v386 = vshrl.u32 2475754826, %v383
        %v387 = vor.u32 %v385, %v386
        %v388 = vshll.u32 2475754826, %v382
        %v389 = vshrl.u32 2131351028, %v383
        %v390 = vor.u32 %v388, %v389
        %v391 = vshll.u32 2131351028, %v382
        %v392 = vshrl.u32 2102212464, %v383
        %v393 = vor.u32 %v391, %v392
        %v394 = vshll.u32 2102212464, %v382
        %v395 = vshrl.u32 920167782, %v383
        %v396 = vor.u32 %v394, %v395
        %v397 = vshll.u32 920167782, %v382
        %v398 = vshrl.u32 1326507024, %v383
        %v399 = vor.u32 %v397, %v398
        %vm400 = vcmp.lt.s32.totalorder %v381, 1
        %vm401 = vcmp.lt.s32.totalorder %v381, 2
        %vm402 = vcmp.lt.s32.totalorder %v381, 3
        %vm403 = vcmp.lt.s32.totalorder %v381, 4
        %v404 = vsel %vm400, %v384, %v387
        %v405 = vsel %vm403, %v393, 2102212464
        %v406 = vsel %vm402, %v390, %v405
        %v407 = vsel %vm401, %v404, %v406
        %v408 = vsel %vm400, %v387, %v390
        %v409 = vsel %vm403, %v396, 920167782
        %v410 = vsel %vm402, %v393, %v409
        %v411 = vsel %vm401, %v408, %v410
        %v412 = vsel %vm400, %v390, %v393
        %v413 = vsel %vm403, %v399, 1326507024
        %v414 = vsel %vm402, %v396, %v413
        %v415 = vsel %vm401, %v412, %v414
        %v416 = vshll.u32 %v376, 8
        %v417 = vmul.u32.u64.compose %v416, %v415
        %v418 = vextract.low.u32 %v417
        %v419 = vextract.high.u32 %v417
        %v420 = vmul.u32.u64.compose %v416, %v411
        %v421 = vextract.low.u32 %v420
        %v422 = vextract.high.u32 %v420
        %v423 = vmul.u32 %v416, %v407
        %v424 = vadd.s32 %v419, %v421
        %vm425 = vc.u32 %v419, %v421
        %v426 = vadd.s32 %v422, 1
        %v427 = vsel %vm425, %v426, %v422
        %v428 = vadd.s32 %v423, %v427
        %v429 = vadd.s32 %v428, 536870912
        %v430 = vshrl.u32 %v429, 30
        %v431 = vshll.u32 %v430, 30
        %v432 = vsub.s32 %v428, %v431
        %vm433 = vcmp.lt.s32.totalorder %v432, 0
        %v434 = vsub.s32 0, %v432
        %v435 = vsel %vm433, %v434, %v432
        %v436 = vclz %v435
        %v437 = vsub.s32 %v436, 2
        %vm438 = vcmp.gt.s32.totalorder 0, %v437
        %v439 = vsel %vm438, 0, %v437
        %v440 = vsub.s32 32, %v439
        %v441 = vshll.u32 %v432, %v439
        %v442 = vshrl.u32 %v424, %v440
        %v443 = vor.u32 %v441, %v442
        %v444 = vsub.s32 4294967266, %v439
        %v445 = vadd.s32 %v444, 127
        %v446 = vshll.u32 %v445, 23
        %v447 = vor.u32 4788187, %v446
        %v448 = vand.u32 2147483647, %v447
        %v450 = vcvt.s32.f32 %v443
        %v451 = vmul.f32 %v450, %v448
        %v452 = vxor.u32 %v451, 2147483648
        %v453 = vsel %vm370, %v452, %v451
        %v454 = vsub.s32 4, %v430
        %v455 = vsel %vm370, %v454, %v430
        %v456 = vsel %vm369, %v367, %v453
        %v457 = vsel %vm369, 0, %v455
        %v458 = vcosq.f32.pop %v456
        %v459 = vsinq.f32.pop %v456
        %vm460 = vweird.f32 %v367
        %v461 = vadd.s32 %v457, 3
        %v462 = vand.u32 %v461, 3
        %vm463 = vcmp.lt.s32.totalorder %v462, 2
        %vm464 = vcmp.eq.s32.totalorder %v462, 0
        %v465 = vxor.u32 %v459, 2147483648
        %v466 = vsel %vm464, %v458, %v465
        %vm467 = vcmp.eq.s32.totalorder %v462, 2
        %v468 = vxor.u32 %v458, 2147483648
        %v469 = vsel %vm467, %v468, %v459
        %v470 = vsel %vm463, %v466, %v469
        %v471 = vsel %vm460, nan, %v470
        %472 = vst.msk [vmem:[%s266] sm:$0xff] %vm278, %v471
        %s473 = sand.u32 %s145, 1
        %s474 = scalar_lea.sflag [#allocation4], %s473
        %s475 = sand.u32 %s145, 1
        %s476 = smul.addr %s475, 8
        %s477 = scalar_lea.vmem [#allocation7], %s476
        // Predicated region
        $region45: #{tpu_custom_call.1} parent=35 // pred_check
          %p478 = pneg %p155
        $region46: #{tpu_custom_call.1} parent=35 // pred_check_branch
          %480 = sbr.rel (%p478) target = $region48
        $region47: #{tpu_custom_call.1} parent=35 // pred_region
          %s482 = ssub.s32 128, 128
          %483 = vsyncadd %s474, %s482
          %s484 = sadd.s32 %s27, %s26
          %s485 = smul.addr %s484, 128
          %s486 = scalar_lea.hbm %s4, %s485
          %s488 = sshll.u32 %s477, 4
          %s489 = int_to_ptr.vmem [resolvable:$true] %s488
          %491 = dma.vmem_to_hbm [thread:$0]  %s489, 128, %s486, %s474
        $region48: #{tpu_custom_call.1} parent=35 // pred_fallthru
          _
      $region36: #{tpu_custom_call.1} parent=5 // pred_fallthru
        _
      %p492 = scmp.le.s32.totalorder 2, %s17
      // Predicated region
      $region49: #{tpu_custom_call.1} parent=5 // pred_check
        %p493 = pneg %p492
      $region50: #{tpu_custom_call.1} parent=5 // pred_check_branch
        %495 = sbr.rel (%p493) target = $region52
      $region51: #{tpu_custom_call.1} parent=5 // pred_region
        %s496 = ssub.s32 %s17, 2
        // Predicated region
        $region53: #{tpu_custom_call.1} parent=51 // pred_check
          %p497 = pneg %p161
        $region54: #{tpu_custom_call.1} parent=51 // pred_check_branch
          %499 = sbr.rel (%p497) target = $region56
        $region55: #{tpu_custom_call.1} parent=51 // pred_region
          %s500 = sand.u32 %s146, 1
          %s501 = scalar_lea.sflag [#allocation4], %s500
          %s502 = sand.u32 %s146, 1
          %s503 = smul.addr %s502, 8
          %s504 = scalar_lea.vmem [#allocation7], %s503
          %505 = dma.done %s501, 128
        $region56: #{tpu_custom_call.1} parent=51 // pred_fallthru
          _
      $region52: #{tpu_custom_call.1} parent=5 // pred_fallthru
        _
    $region6: #{tpu_custom_call.1} parent=1 // loop_footer
      %s21 = sadd.s32 1, %s17
    $region7: #{tpu_custom_call.1} parent=1 // loop_footer_branch
      %16 = sbr.rel target = $region3
    $region8: #{tpu_custom_call.1} parent=1 // loop_exit
      _
    %506 = vsyncpa [#allocation3], 1
    %s507 = scalar_lea.sflag [#allocation3], 1
    %508 = vsyncpa %s507, 1
    %509 = vsyncpa [#allocation6], 1
    %510 = vsyncpa [#allocation4], 1
    %s511 = scalar_lea.sflag [#allocation4], 1
    %512 = vsyncpa %s511, 1

// kernel: tpu_custom_call.1
$region0: #{tpu_custom_call.1}
  #allocation0 [shape = 'u32[]', space=smem, size = 0x4, offset = 0x4, fixed_abs, tag = 'smem constant byte address 0x4 - core index']
  #allocation1 [shape = 'u32[144,128]{1,0:T(1,128)}', space=vmem, size = 0x12000, scoped, tag = 'internal scratch']
  %s0 = inlined_call_operand.hbm [shape: f32[2,8,32], index: 0, kind: input, shape index: {}]
  %s1 = inlined_call_operand.hbm [shape: f32[32,32], index: 1, kind: input, shape index: {}]
  %s2 = inlined_call_operand.vmem [shape: f32[2,1,32], index: 2, kind: input, shape index: {}]
  %s3 = inlined_call_operand.vmem [shape: f32[2,1,32], index: 3, kind: input, shape index: {}]
  %s4 = inlined_call_operand.hbm [shape: f32[2,8,32], index: 4, kind: output, shape index: {}]
  %s5 = sld [smem:[#allocation0]]
  $region57: #{tpu_custom_call.1} parent=0
    _
  %s7 = ssub.s32 1, %s5
  %s8 = scalar_select 0, %s7, %s5
  $region1: #{tpu_custom_call.1} parent=0
    #allocation2 [shape = 'u8[8192]{0}', space=vmem, size = 0x2000, scoped, tag = 'input window, operand 0']
    #allocation3 [shape = 's32[2]{0}', space=sflag, size = 0x8, scoped, tag = 'scoped memory for tpu_custom_call.1']
    #allocation4 [shape = 's32[2]{0}', space=sflag, size = 0x8, scoped, tag = 'scoped memory for tpu_custom_call.1']
    #allocation5 [shape = 'u8[16384]{0}', space=vmem, size = 0x4000, scoped, tag = 'input window, operand 1, single buffered']
    #allocation6 [shape = 's32[1]{0}', space=sflag, size = 0x4, scoped, tag = 'scoped memory for tpu_custom_call.1']
    #allocation7 [shape = 'u8[8192]{0}', space=vmem, size = 0x2000, scoped, tag = 'output window, operand 0']
    %9 = vsyncpa [#allocation3], 0
    %s10 = scalar_lea.sflag [#allocation3], 1
    %11 = vsyncpa %s10, 0
    %12 = vsyncpa [#allocation6], 0
    %13 = vsyncpa [#allocation4], 0
    %s14 = scalar_lea.sflag [#allocation4], 1
    %15 = vsyncpa %s14, 0
    loop: start=0, step=1, limit=4
    $region2: #{tpu_custom_call.1} parent=1 // loop_pre_header
      _
    $region3: #{tpu_custom_call.1} parent=1 // loop_header
      %s17 = sphi 0, %s21
      %p18 = scmp.ge.s32.totalorder %s17, 4
      %s24 = sphi 0, %s36
      %s25 = sphi 0, %s32
      %s26 = sphi 0, %s24
      %s27 = sphi 0, %s25
      %s28 = sphi 0, %s26
      %s29 = sphi 0, %s27
      %s41 = sphi 0, %s43
      %s44 = sphi 0, %s41
      %s45 = sphi 0, %s44
      %s61 = sphi 0, %s45
      %s65 = sphi 0, %s65
      %s67 = sphi 0, %s65
      %s68 = sphi 0, %s67
      %s82 = sphi 0, %s68
      %s88 = sphi 0, %s90
      %s91 = sphi 0, %s88
      %s92 = sphi 0, %s91
      %s108 = sphi 0, %s92
      %s114 = sphi 0, %s116
      %s117 = sphi 0, %s114
      %s118 = sphi 0, %s117
      %s134 = sphi 0, %s118
      %s142 = sphi 0, %s144
      %s145 = sphi 0, %s142
      %s146 = sphi 0, %s145
      %s162 = sphi 0, %s146
    $region4: #{tpu_custom_call.1} parent=1 // loop_header_branch
      %20 = sbr.rel (%p18) target = $region8
    $region5: #{tpu_custom_call.1} parent=1 // loop_body
      %s22 = ssub.s32 %s17, 1
      %s23 = ssub.s32 %s17, 2
      %s30 = sadd.s32 1, %s25
      %p31 = scmp.ge.s32.totalorder %s30, 1
      %s32 = scalar_select %p31, 0, %s30
      %s33 = sadd.s32 1, %s24
      %s34 = scalar_select %p31, %s33, %s24
      %p35 = scmp.ge.s32.totalorder %s34, 2
      %s36 = scalar_select %p35, 0, %s34
      %s37 = ssub.s32 %s24, %s36
      %s38 = ssub.s32 %s25, %s32
      %s39 = sor.u32 %s37, %s38
      %p40 = scmp.eq.s32.totalorder %s39, 0
      %s42 = sadd.s32 %s41, 1
      %s43 = scalar_select %p40, %s41, %s42
      %p46 = pneg %p40
      %p47 = scmp.eq.s32.totalorder %s17, 1
      %p48 = por %p46, %p47
      %p49 = scmp.ne.s32.totalorder %s41, %s44
      %p50 = scmp.eq.s32.totalorder %s17, 0
      %p51 = por %p49, %p50
      %p52 = scmp.ne.s32.totalorder %s41, %s44
      %p53 = scmp.eq.s32.totalorder %s22, 1
      %p54 = por %p52, %p53
      %p55 = scmp.ne.s32.totalorder %s44, %s45
      %p56 = scmp.eq.s32.totalorder %s22, 0
      %p57 = por %p55, %p56
      %p58 = scmp.ne.s32.totalorder %s44, %s45
      %p59 = scmp.eq.s32.totalorder %s23, 1
      %p60 = por %p58, %p59
      %p62 = scmp.ne.s32.totalorder %s45, %s61
      %p63 = scmp.eq.s32.totalorder %s23, 0
      %p64 = por %p62, %p63
      %s66 = sadd.s32 %s65, 1
      %p69 = scmp.eq.s32.totalorder %s17, 1
      %p70 = scmp.ne.s32.totalorder %s65, %s67
      %p71 = scmp.eq.s32.totalorder %s17, 0
      %p72 = por %p70, %p71
      %p73 = scmp.ne.s32.totalorder %s65, %s67
      %p74 = scmp.eq.s32.totalorder %s22, 1
      %p75 = por %p73, %p74
      %p76 = scmp.ne.s32.totalorder %s67, %s68
      %p77 = scmp.eq.s32.totalorder %s22, 0
      %p78 = por %p76, %p77
      %p79 = scmp.ne.s32.totalorder %s67, %s68
      %p80 = scmp.eq.s32.totalorder %s23, 1
      %p81 = por %p79, %p80
      %p83 = scmp.ne.s32.totalorder %s68, %s82
      %p84 = scmp.eq.s32.totalorder %s23, 0
      %p85 = por %p83, %p84
      %s86 = ssub.s32 %s24, %s36
      %p87 = scmp.eq.s32.totalorder %s86, 0
      %s89 = sadd.s32 %s88, 1
      %s90 = scalar_select %p87, %s88, %s89
      %p93 = pneg %p87
      %p94 = scmp.eq.s32.totalorder %s17, 1
      %p95 = por %p93, %p94
      %p96 = scmp.ne.s32.totalorder %s88, %s91
      %p97 = scmp.eq.s32.totalorder %s17, 0
      %p98 = por %p96, %p97
      %p99 = scmp.ne.s32.totalorder %s88, %s91
      %p100 = scmp.eq.s32.totalorder %s22, 1
      %p101 = por %p99, %p100
      %p102 = scmp.ne.s32.totalorder %s91, %s92
      %p103 = scmp.eq.s32.totalorder %s22, 0
      %p104 = por %p102, %p103
      %p105 = scmp.ne.s32.totalorder %s91, %s92
      %p106 = scmp.eq.s32.totalorder %s23, 1
      %p107 = por %p105, %p106
      %p109 = scmp.ne.s32.totalorder %s92, %s108
      %p110 = scmp.eq.s32.totalorder %s23, 0
      %p111 = por %p109, %p110
      %s112 = ssub.s32 %s24, %s36
      %p113 = scmp.eq.s32.totalorder %s112, 0
      %s115 = sadd.s32 %s114, 1
      %s116 = scalar_select %p113, %s114, %s115
      %p119 = pneg %p113
      %p120 = scmp.eq.s32.totalorder %s17, 1
      %p121 = por %p119, %p120
      %p122 = scmp.ne.s32.totalorder %s114, %s117
      %p123 = scmp.eq.s32.totalorder %s17, 0
      %p124 = por %p122, %p123
      %p125 = scmp.ne.s32.totalorder %s114, %s117
      %p126 = scmp.eq.s32.totalorder %s22, 1
      %p127 = por %p125, %p126
      %p128 = scmp.ne.s32.totalorder %s117, %s118
      %p129 = scmp.eq.s32.totalorder %s22, 0
      %p130 = por %p128, %p129
      %p131 = scmp.ne.s32.totalorder %s117, %s118
      %p132 = scmp.eq.s32.totalorder %s23, 1
      %p133 = por %p131, %p132
      %p135 = scmp.ne.s32.totalorder %s118, %s134
      %p136 = scmp.eq.s32.totalorder %s23, 0
      %p137 = por %p135, %p136
      %s138 = ssub.s32 %s24, %s36
      %s139 = ssub.s32 %s25, %s32
      %s140 = sor.u32 %s138, %s139
      %p141 = scmp.eq.s32.totalorder %s140, 0
      %s143 = sadd.s32 %s142, 1
      %s144 = scalar_select %p141, %s142, %s143
      %p147 = pneg %p141
      %p148 = scmp.eq.s32.totalorder %s17, 1
      %p149 = por %p147, %p148
      %p150 = scmp.ne.s32.totalorder %s142, %s145
      %p151 = scmp.eq.s32.totalorder %s17, 0
      %p152 = por %p150, %p151
      %p153 = scmp.ne.s32.totalorder %s142, %s145
      %p154 = scmp.eq.s32.totalorder %s22, 1
      %p155 = por %p153, %p154
      %p156 = scmp.ne.s32.totalorder %s145, %s146
      %p157 = scmp.eq.s32.totalorder %s22, 0
      %p158 = por %p156, %p157
      %p159 = scmp.ne.s32.totalorder %s145, %s146
      %p160 = scmp.eq.s32.totalorder %s23, 1
      %p161 = por %p159, %p160
      %p163 = scmp.ne.s32.totalorder %s146, %s162
      %p164 = scmp.eq.s32.totalorder %s23, 0
      %p165 = por %p163, %p164
      %p166 = scmp.le.s32.totalorder 1, %s17
      %p167 = scmp.lt.s32.totalorder %s17, 3
      %p168 = pnand %p166, %p167
      %p169 = pneg %p168
      // Predicated region
      $region9: #{tpu_custom_call.1} parent=5 // pred_check
        _
      $region10: #{tpu_custom_call.1} parent=5 // pred_check_branch
        %171 = sbr.rel (%p168) target = $region12
      $region11: #{tpu_custom_call.1} parent=5 // pred_region
        %s172 = ssub.s32 %s17, 1
        // Predicated region
        $region13: #{tpu_custom_call.1} parent=11 // pred_check
          %p173 = pneg %p78
        $region14: #{tpu_custom_call.1} parent=11 // pred_check_branch
          %175 = sbr.rel (%p173) target = $region16
        $region15: #{tpu_custom_call.1} parent=11 // pred_region
          %s177 = ssub.s32 512, 512
          %178 = vsyncadd [#allocation6], %s177
          %s179 = sshll.u32 [#allocation5], 4
          %s180 = int_to_ptr.vmem [resolvable:$true] %s179
          %185 = dma.hbm_to_vmem [thread:$0]  %s1, 512, %s180, [#allocation6], 128, 128, 8
        $region16: #{tpu_custom_call.1} parent=11 // pred_fallthru
          _
      $region12: #{tpu_custom_call.1} parent=5 // pred_fallthru
        _
      %p186 = scmp.lt.s32.totalorder %s17, 2
      // Predicated region
      $region17: #{tpu_custom_call.1} parent=5 // pred_check
        %p187 = pneg %p186
      $region18: #{tpu_custom_call.1} parent=5 // pred_check_branch
        %189 = sbr.rel (%p187) target = $region20
      $region19: #{tpu_custom_call.1} parent=5 // pred_region
        // Predicated region
        $region21: #{tpu_custom_call.1} parent=19 // pred_check
          %p190 = pneg %p51
        $region22: #{tpu_custom_call.1} parent=19 // pred_check_branch
          %192 = sbr.rel (%p190) target = $region24
        $region23: #{tpu_custom_call.1} parent=19 // pred_region
          %s193 = sand.u32 %s41, 1
          %s194 = scalar_lea.sflag [#allocation3], %s193
          %s195 = sand.u32 %s41, 1
          %s196 = smul.addr %s195, 8
          %s197 = scalar_lea.vmem [#allocation2], %s196
          %s199 = ssub.s32 128, 128
          %200 = vsyncadd %s194, %s199
          %s201 = sadd.s32 %s25, %s24
          %s202 = smul.addr %s201, 128
          %s203 = scalar_lea.hbm %s0, %s202
          %s205 = sshll.u32 %s197, 4
          %s206 = int_to_ptr.vmem [resolvable:$true] %s205
          %208 = dma.hbm_to_vmem [thread:$0]  %s203, 128, %s206, %s194
        $region24: #{tpu_custom_call.1} parent=19 // pred_fallthru
          _
        // Predicated region
        $region25: #{tpu_custom_call.1} parent=19 // pred_check
          %p209 = pneg %p98
        $region26: #{tpu_custom_call.1} parent=19 // pred_check_branch
          %211 = sbr.rel (%p209) target = $region28
        $region27: #{tpu_custom_call.1} parent=19 // pred_region
          %p212 = scmp.lt.s32.totalorder %s24, 1
          %s213 = scalar_select %p212, %s24, 1
          %s214 = scalar_lea.vmem %s2, %s213
        $region28: #{tpu_custom_call.1} parent=19 // pred_fallthru
          _
        // Predicated region
        $region29: #{tpu_custom_call.1} parent=19 // pred_check
          %p215 = pneg %p124
        $region30: #{tpu_custom_call.1} parent=19 // pred_check_branch
          %217 = sbr.rel (%p215) target = $region32
        $region31: #{tpu_custom_call.1} parent=19 // pred_region
          %p218 = scmp.lt.s32.totalorder %s24, 1
          %s219 = scalar_select %p218, %s24, 1
          %s220 = scalar_lea.vmem %s3, %s219
        $region32: #{tpu_custom_call.1} parent=19 // pred_fallthru
          _
      $region20: #{tpu_custom_call.1} parent=5 // pred_fallthru
        _
      %p221 = scmp.le.s32.totalorder 1, %s17
      %p222 = scmp.lt.s32.totalorder %s17, 3
      %p223 = pnand %p221, %p222
      %p224 = pneg %p223
      // Predicated region
      $region33: #{tpu_custom_call.1} parent=5 // pred_check
        _
      $region34: #{tpu_custom_call.1} parent=5 // pred_check_branch
        %226 = sbr.rel (%p223) target = $region36
      $region35: #{tpu_custom_call.1} parent=5 // pred_region
        %s227 = ssub.s32 %s17, 1
        %s228 = sand.u32 %s44, 1
        %s229 = scalar_lea.sflag [#allocation3], %s228
        %s230 = sand.u32 %s44, 1
        %s231 = smul.addr %s230, 8
        %s232 = scalar_lea.vmem [#allocation2], %s231
        // Predicated region
        $region37: #{tpu_custom_call.1} parent=35 // pred_check
          %p233 = pneg %p57
        $region38: #{tpu_custom_call.1} parent=35 // pred_check_branch
          %235 = sbr.rel (%p233) target = $region40
        $region39: #{tpu_custom_call.1} parent=35 // pred_region
          %236 = dma.done %s229, 128
        $region40: #{tpu_custom_call.1} parent=35 // pred_fallthru
          _
        // Predicated region
        $region41: #{tpu_custom_call.1} parent=35 // pred_check
          %p237 = pneg %p78
        $region42: #{tpu_custom_call.1} parent=35 // pred_check_branch
          %239 = sbr.rel (%p237) target = $region44
        $region43: #{tpu_custom_call.1} parent=35 // pred_region
          %240 = dma.done [#allocation6], 512
        $region44: #{tpu_custom_call.1} parent=35 // pred_fallthru
          _
        %s241 = sand.u32 %s44, 1
        %s242 = scalar_lea.sflag [#allocation3], %s241
        %s243 = sand.u32 %s44, 1
        %s244 = smul.addr %s243, 8
        %s245 = scalar_lea.vmem [#allocation2], %s244
        %p246 = pneg %p57
        %p247 = pneg %p54
        %p248 = pneg %p78
        %p249 = pneg %p75
        %p250 = scmp.lt.s32.totalorder %s26, 1
        %s251 = scalar_select %p250, %s26, 1
        %s252 = scalar_lea.vmem %s2, %s251
        %p253 = pneg %p104
        %p254 = pneg %p101
        %p255 = scmp.lt.s32.totalorder %s26, 1
        %s256 = scalar_select %p255, %s26, 1
        %s257 = scalar_lea.vmem %s3, %s256
        %p258 = pneg %p130
        %p259 = pneg %p127
        %p260 = pneg %p158
        %p261 = pneg %p155
        %s262 = sand.u32 %s145, 1
        %s263 = scalar_lea.sflag [#allocation4], %s262
        %s264 = sand.u32 %s145, 1
        %s265 = smul.addr %s264, 8
        %s266 = scalar_lea.vmem [#allocation7], %s265
        %p267 = scmp.lt.s32.totalorder %s26, 1
        %s268 = scalar_select %p267, %s26, 1
        %s269 = scalar_lea.vmem %s2, %s268
        %p270 = scmp.lt.s32.totalorder %s26, 1
        %s271 = scalar_select %p270, %s26, 1
        %s272 = scalar_lea.vmem %s3, %s271
        %v273 = vld [vmem:[%s232] sm:$0xff]
        %v274 = vld [vmem:[#allocation5] sm:$0xff]
        %v275 = vld [vmem:[#allocation5 + $0x8] sm:$0xff]
        %v276 = vld [vmem:[#allocation5 + $0x10] sm:$0xff]
        %v277 = vld [vmem:[#allocation5 + $0x18] sm:$0xff]
        %vm278 = vcmask 261120
        %v280 = vsel %vm278, %v273, 0
        %282 = vmatprep.subr.mxu0 0.0
        %283 = vmatpush1.msra.mxu0 %v274
        %284 = vmatprep.subr.mxu0 0.0
        %285 = vmatpush1.msra.mxu0 %v275
        %286 = vmatprep.subr.mxu0 0.0
        %287 = vmatpush1.msra.mxu0 %v276
        %288 = vmatprep.subr.mxu0 0.0
        %289 = vmatpush1.msra.mxu0 %v277
        %290 = vmatprep.subr.mxu0 0.0
        %291 = vmatpush1.msra.mxu0 0.0
        %292 = vmatprep.subr.mxu0 0.0
        %293 = vmatpush1.msra.mxu0 0.0
        %294 = vmatprep.subr.mxu0 0.0
        %295 = vmatpush1.msra.mxu0 0.0
        %296 = vmatprep.subr.mxu0 0.0
        %297 = vmatpush1.msra.mxu0 0.0
        %298 = vmatprep.subr.mxu0 0.0
        %299 = vmatpush1.msra.mxu0 0.0
        %300 = vmatprep.subr.mxu0 0.0
        %301 = vmatpush1.msra.mxu0 0.0
        %302 = vmatprep.subr.mxu0 0.0
        %303 = vmatpush1.msra.mxu0 0.0
        %304 = vmatprep.subr.mxu0 0.0
        %305 = vmatpush1.msra.mxu0 0.0
        %306 = vmatprep.subr.mxu0 0.0
        %307 = vmatpush1.msra.mxu0 0.0
        %308 = vmatprep.subr.mxu0 0.0
        %309 = vmatpush1.msra.mxu0 0.0
        %310 = vmatprep.subr.mxu0 0.0
        %311 = vmatpush1.msra.mxu0 0.0
        %312 = vmatprep.subr.mxu0 0.0
        %313 = vmatpush1.msra.mxu0 0.0
        %314 = vmatprep.subr.mxu0 0.0
        %315 = vmatpush1.msra.mxu0 0.0
        %316 = vmatprep.subr.mxu0 0.0
        %317 = vmatpush1.msra.mxu0 0.0
        %318 = vmatprep.subr.mxu0 0.0
        %319 = vmatpush1.msra.mxu0 0.0
        %320 = vmatprep.subr.mxu0 0.0
        %321 = vmatpush1.msra.mxu0 0.0
        %322 = vmatprep.subr.mxu0 0.0
        %323 = vmatpush1.msra.mxu0 0.0
        %324 = vmatprep.subr.mxu0 0.0
        %325 = vmatpush1.msra.mxu0 0.0
        %326 = vmatprep.subr.mxu0 0.0
        %327 = vmatpush1.msra.mxu0 0.0
        %328 = vmatprep.subr.mxu0 0.0
        %329 = vmatpush1.msra.mxu0 0.0
        %330 = vmatprep.subr.mxu0 0.0
        %331 = vmatpush1.msra.mxu0 0.0
        %332 = vmatprep.subr.mxu0 0.0
        %333 = vmatpush1.msra.mxu0 0.0
        %334 = vmatprep.subr.mxu0 0.0
        %335 = vmatpush1.msra.mxu0 0.0
        %336 = vmatprep.subr.mxu0 0.0
        %337 = vmatpush1.msra.mxu0 0.0
        %338 = vmatprep.subr.mxu0 0.0
        %339 = vmatpush1.msra.mxu0 0.0
        %340 = vmatprep.subr.mxu0 0.0
        %341 = vmatpush1.msra.mxu0 0.0
        %342 = vmatprep.subr.mxu0 0.0
        %343 = vmatpush1.msra.mxu0 0.0
        %344 = vmatprep.subr.mxu0 0.0
        %345 = vmatpush1.msra.mxu0 0.0
        %346 = vmatprep.mubr.f32.mxu0 0.0
        %347 = vmatmul.mubr.f32.gmra.mrb[0].mxu0 %v280
        %v348 = vpop.f32.mrb[0].mxu0
        %v349 = vadd.f32 0.0, %v348
        %v350 = vpop.f32.mrb[0].mxu0
        %351 = vdwg.mxu0
        %v352 = vld [vmem:[%s269] sm:$0x1]
        %v354 = vlaneseq
        %v355 = vshrl.u32 %v354, 7
        %v356 = vsub.s32 0, %v355
        %v357 = vrot.slane %v352, %v356
        %v359 = vmul.f32 %v357, %v349
        %v360 = vld [vmem:[%s272] sm:$0x1]
        %v362 = vlaneseq
        %v363 = vshrl.u32 %v362, 7
        %v364 = vsub.s32 0, %v363
        %v365 = vrot.slane %v360, %v364
        %v367 = vadd.f32 %v359, %v365
        %v368 = vand.u32 2147483647, %v367
        %vm369 = vcmp.le.f32.partialorder %v368, 0.7853982
        %vm370 = vcmp.lt.s32.totalorder %v367, 0
        %v371 = vand.u32 %v367, 2139095040
        %v372 = vshrl.u32 %v371, 23
        %v373 = vsub.s32 %v372, 127
        %v374 = vand.u32 2147483647, %v367
        %v375 = vand.u32 %v374, 8388607
        %v376 = vor.u32 %v375, 8388608
        %v377 = vsub.s32 0, %v376
        %v378 = vadd.s32 %v373, 1
        %vm379 = vcmp.gt.s32.totalorder %v378, 0
        %v380 = vsel %vm379, %v378, 0
        %v381 = vshrl.u32 %v380, 5
        %v382 = vand.u32 %v380, 31
        %v383 = vsub.s32 32, %v382
        %v384 = vshrl.u32 683565275, %v383
        %v385 = vshll.u32 683565275, %v382
        %v386 = vshrl.u32 2475754826, %v383
        %v387 = vor.u32 %v385, %v386
        %v388 = vshll.u32 2475754826, %v382
        %v389 = vshrl.u32 2131351028, %v383
        %v390 = vor.u32 %v388, %v389
        %v391 = vshll.u32 2131351028, %v382
        %v392 = vshrl.u32 2102212464, %v383
        %v393 = vor.u32 %v391, %v392
        %v394 = vshll.u32 2102212464, %v382
        %v395 = vshrl.u32 920167782, %v383
        %v396 = vor.u32 %v394, %v395
        %v397 = vshll.u32 920167782, %v382
        %v398 = vshrl.u32 1326507024, %v383
        %v399 = vor.u32 %v397, %v398
        %vm400 = vcmp.lt.s32.totalorder %v381, 1
        %vm401 = vcmp.lt.s32.totalorder %v381, 2
        %vm402 = vcmp.lt.s32.totalorder %v381, 3
        %vm403 = vcmp.lt.s32.totalorder %v381, 4
        %v404 = vsel %vm400, %v384, %v387
        %v405 = vsel %vm403, %v393, 2102212464
        %v406 = vsel %vm402, %v390, %v405
        %v407 = vsel %vm401, %v404, %v406
        %v408 = vsel %vm400, %v387, %v390
        %v409 = vsel %vm403, %v396, 920167782
        %v410 = vsel %vm402, %v393, %v409
        %v411 = vsel %vm401, %v408, %v410
        %v412 = vsel %vm400, %v390, %v393
        %v413 = vsel %vm403, %v399, 1326507024
        %v414 = vsel %vm402, %v396, %v413
        %v415 = vsel %vm401, %v412, %v414
        %v416 = vshll.u32 %v376, 8
        %v417 = vmul.u32.u64.compose %v416, %v415
        %v418 = vextract.low.u32 %v417
        %v419 = vextract.high.u32 %v417
        %v420 = vmul.u32.u64.compose %v416, %v411
        %v421 = vextract.low.u32 %v420
        %v422 = vextract.high.u32 %v420
        %v423 = vmul.u32 %v416, %v407
        %v424 = vadd.s32 %v419, %v421
        %vm425 = vc.u32 %v419, %v421
        %v426 = vadd.s32 %v422, 1
        %v427 = vsel %vm425, %v426, %v422
        %v428 = vadd.s32 %v423, %v427
        %v429 = vadd.s32 %v428, 536870912
        %v430 = vshrl.u32 %v429, 30
        %v431 = vshll.u32 %v430, 30
        %v432 = vsub.s32 %v428, %v431
        %vm433 = vcmp.lt.s32.totalorder %v432, 0
        %v434 = vsub.s32 0, %v432
        %v435 = vsel %vm433, %v434, %v432
        %v436 = vclz %v435
        %v437 = vsub.s32 %v436, 2
        %vm438 = vcmp.gt.s32.totalorder 0, %v437
        %v439 = vsel %vm438, 0, %v437
        %v440 = vsub.s32 32, %v439
        %v441 = vshll.u32 %v432, %v439
        %v442 = vshrl.u32 %v424, %v440
        %v443 = vor.u32 %v441, %v442
        %v444 = vsub.s32 4294967266, %v439
        %v445 = vadd.s32 %v444, 127
        %v446 = vshll.u32 %v445, 23
        %v447 = vor.u32 4788187, %v446
        %v448 = vand.u32 2147483647, %v447
        %v450 = vcvt.s32.f32 %v443
        %v451 = vmul.f32 %v450, %v448
        %v452 = vxor.u32 %v451, 2147483648
        %v453 = vsel %vm370, %v452, %v451
        %v454 = vsub.s32 4, %v430
        %v455 = vsel %vm370, %v454, %v430
        %v456 = vsel %vm369, %v367, %v453
        %v457 = vsel %vm369, 0, %v455
        %v458 = vcosq.f32.pop %v456
        %v459 = vsinq.f32.pop %v456
        %vm460 = vweird.f32 %v367
        %v461 = vadd.s32 %v457, 3
        %v462 = vand.u32 %v461, 3
        %vm463 = vcmp.lt.s32.totalorder %v462, 2
        %vm464 = vcmp.eq.s32.totalorder %v462, 0
        %v465 = vxor.u32 %v459, 2147483648
        %v466 = vsel %vm464, %v458, %v465
        %vm467 = vcmp.eq.s32.totalorder %v462, 2
        %v468 = vxor.u32 %v458, 2147483648
        %v469 = vsel %vm467, %v468, %v459
        %v470 = vsel %vm463, %v466, %v469
        %v471 = vsel %vm460, nan, %v470
        %472 = vst.msk [vmem:[%s266] sm:$0xff] %vm278, %v471
        %s473 = sand.u32 %s145, 1
        %s474 = scalar_lea.sflag [#allocation4], %s473
        %s475 = sand.u32 %s145, 1
        %s476 = smul.addr %s475, 8
        %s477 = scalar_lea.vmem [#allocation7], %s476
        // Predicated region
        $region45: #{tpu_custom_call.1} parent=35 // pred_check
          %p478 = pneg %p155
        $region46: #{tpu_custom_call.1} parent=35 // pred_check_branch
          %480 = sbr.rel (%p478) target = $region48
        $region47: #{tpu_custom_call.1} parent=35 // pred_region
          %s482 = ssub.s32 128, 128
          %483 = vsyncadd %s474, %s482
          %s484 = sadd.s32 %s27, %s26
          %s485 = smul.addr %s484, 128
          %s486 = scalar_lea.hbm %s4, %s485
          %s488 = sshll.u32 %s477, 4
          %s489 = int_to_ptr.vmem [resolvable:$true] %s488
          %491 = dma.vmem_to_hbm [thread:$0]  %s489, 128, %s486, %s474
        $region48: #{tpu_custom_call.1} parent=35 // pred_fallthru
          _
      $region36: #{tpu_custom_call.1} parent=5 // pred_fallthru
        _
      %p492 = scmp.le.s32.totalorder 2, %s17
      // Predicated region
      $region49: #{tpu_custom_call.1} parent=5 // pred_check
        %p493 = pneg %p492
      $region50: #{tpu_custom_call.1} parent=5 // pred_check_branch
        %495 = sbr.rel (%p493) target = $region52
      $region51: #{tpu_custom_call.1} parent=5 // pred_region
        %s496 = ssub.s32 %s17, 2
        // Predicated region
        $region53: #{tpu_custom_call.1} parent=51 // pred_check
          %p497 = pneg %p161
        $region54: #{tpu_custom_call.1} parent=51 // pred_check_branch
          %499 = sbr.rel (%p497) target = $region56
        $region55: #{tpu_custom_call.1} parent=51 // pred_region
          %s500 = sand.u32 %s146, 1
          %s501 = scalar_lea.sflag [#allocation4], %s500
          %s502 = sand.u32 %s146, 1
          %s503 = smul.addr %s502, 8
          %s504 = scalar_lea.vmem [#allocation7], %s503
          %505 = dma.done %s501, 128
        $region56: #{tpu_custom_call.1} parent=51 // pred_fallthru
          _
      $region52: #{tpu_custom_call.1} parent=5 // pred_fallthru
        _
    $region6: #{tpu_custom_call.1} parent=1 // loop_footer
      %s21 = sadd.s32 1, %s17
    $region7: #{tpu_custom_call.1} parent=1 // loop_footer_branch
      %16 = sbr.rel target = $region3
    $region8: #{tpu_custom_call.1} parent=1 // loop_exit
      _
    %506 = vsyncpa [#allocation3], 1
    %s507 = scalar_lea.sflag [#allocation3], 1
    %508 = vsyncpa %s507, 1
    %509 = vsyncpa [#allocation6], 1
    %510 = vsyncpa [#allocation4], 1
    %s511 = scalar_lea.sflag [#allocation4], 1
    %512 = vsyncpa %s511, 1

</llo_original>
